<compile_context>
chip_gen: v6e
topology: v6e:2x2x1
jax: 0.10.0
libtpu: 0.0.40
codegen_flags: <defaults>
</compile_context>

<pallas_src>
import numpy as np
import jax
import jax.numpy as jnp
from jax.experimental import pallas as pl
from jax.experimental.pallas import tpu as pltpu

_LANE = 128
_SUB = 8


def _round_up(x, m):
    return (x + m - 1) // m * m


def _pick_tile(b):
    bp = _round_up(max(int(b), 1), _SUB)
    return bp if bp <= _LANE else _LANE


# ----------------------------- Pallas kernels -----------------------------

def _ppo_fused_kernel(
    x_ref, w_h_ref, b_h_ref, w_heads_ref,        # packed input + merged hidden + head slab
    assign_ref, act_ref, w_pa_ref,                # one-hot repeat, padded act emb, act-head slab
    bias_ref,                                     # SMEM scalars: [b_v, b_p]
    value_ref, scores_ref,                        # lane-dense outputs
):
    i = pl.program_id(0)

    # hidden layer: ONE K=128 MXU pass, bf16 operands, f32 accumulation; bias/ReLU in f32
    h = jnp.dot(x_ref[...], w_h_ref[...], preferred_element_type=jnp.float32)
    feat = jnp.maximum(h + b_h_ref[...], 0.0)                                   # (TB, Hp) f32

    # both 1-wide heads as a single MXU matmul: lane 0 = value, lane 1 = policy(state part)
    heads = jnp.dot(feat.astype(w_heads_ref.dtype), w_heads_ref[...],
                    preferred_element_type=jnp.float32)                         # (TB, 128)
    value_ref[...] = heads + bias_ref[0]                                        # lane 0 = value

    # action scores: init with the per-action term once, then accumulate the per-state term
    # (repeat folded into a full-width one-hot matmul) across batch tiles.
    @pl.when(i == 0)
    def _():
        scores_ref[...] = (
            jnp.dot(act_ref[...], w_pa_ref[...], preferred_element_type=jnp.float32)
            + bias_ref[1]
        )

    scores_ref[...] += jnp.dot(assign_ref[...], heads,
                               preferred_element_type=jnp.float32)              # lane 1 = score


def _state_value_kernel(
    x_ref, w_h_ref, b_h_ref, w_heads_ref, bias_ref,
    feat_ref, value_ref,
):
    h = jnp.dot(x_ref[...], w_h_ref[...], preferred_element_type=jnp.float32)
    feat = jnp.maximum(h + b_h_ref[...], 0.0)
    feat_ref[...] = feat
    heads = jnp.dot(feat.astype(w_heads_ref.dtype), w_heads_ref[...],
                    preferred_element_type=jnp.float32)
    value_ref[...] = heads + bias_ref[0]


# ----------------------------- pallas_call wrappers -----------------------------

_VMEM_LIMIT = 32 * 1024 * 1024  # fits v7x's 64 MiB physical VMEM with headroom


def _pack_inputs(obs, desc, inv, Kp, TB):
    """Concat + zero-pad [obs | desc | inventory] into one lane-padded bf16 slab."""
    B = obs.shape[0]
    Bp = _round_up(B, TB)
    x = jnp.concatenate([obs, desc, inv], axis=1).astype(jnp.float32)
    x = jnp.pad(x, ((0, Bp - B), (0, Kp - x.shape[1])))
    return x.astype(jnp.bfloat16), B, Bp


def fused_forward(kparams, obs_emb, desc_emb, inventory, act_emb, assign):
    Kp, Hp, Ep = kparams["kp"], kparams["hp"], kparams["ep"]
    B = obs_emb.shape[0]
    TB = _pick_tile(B)
    x, _, Bp = _pack_inputs(obs_emb, desc_emb, inventory, Kp, TB)

    A = act_emb.shape[0]
    Ap = _round_up(A, _SUB)
    act = jnp.pad(act_emb.astype(jnp.float32),
                  ((0, Ap - A), (0, Ep - act_emb.shape[1]))).astype(jnp.bfloat16)
    assign_p = jnp.pad(assign.astype(jnp.float32), ((0, Ap - A), (0, Bp - assign.shape[1])))

    grid = (Bp // TB,)
    value_slab, scores_slab = pl.pallas_call(
        _ppo_fused_kernel,
        grid=grid,
        in_specs=[
            pl.BlockSpec((TB, Kp), lambda i: (i, 0)),                  # packed activations
            pl.BlockSpec((Kp, Hp), lambda i: (0, 0)),                  # merged hidden weight
            pl.BlockSpec((1, Hp), lambda i: (0, 0)),                   # hidden bias (f32)
            pl.BlockSpec((Hp, _LANE), lambda i: (0, 0)),               # value/policy head slab
            pl.BlockSpec((Ap, TB), lambda i: (0, i)),                  # one-hot repeat columns
            pl.BlockSpec((Ap, Ep), lambda i: (0, 0)),                  # padded action embeddings
            pl.BlockSpec((Ep, _LANE), lambda i: (0, 0)),               # action-part head slab
            pl.BlockSpec(memory_space=pltpu.MemorySpace.SMEM),         # [b_v, b_p]
        ],
        out_specs=(
            pl.BlockSpec((TB, _LANE), lambda i: (i, 0)),               # value slab (tiled)
            pl.BlockSpec((Ap, _LANE), lambda i: (0, 0)),               # score slab (resident acc)
        ),
        out_shape=(
            jax.ShapeDtypeStruct((Bp, _LANE), jnp.float32),
            jax.ShapeDtypeStruct((Ap, _LANE), jnp.float32),
        ),
        compiler_params=pltpu.CompilerParams(
            dimension_semantics=("arbitrary",),        # scores accumulate across batch tiles
            vmem_limit_bytes=_VMEM_LIMIT,
        ),
    )(x, kparams["w_h"], kparams["b_h"], kparams["w_heads"],
      assign_p, act, kparams["w_pa"], kparams["bias"])

    return scores_slab[:A, 1], value_slab[:B, :1]


def state_value_forward(kparams, obs_emb, desc_emb, inventory):
    Kp, Hp = kparams["kp"], kparams["hp"]
    B = obs_emb.shape[0]
    TB = _pick_tile(B)
    x, _, Bp = _pack_inputs(obs_emb, desc_emb, inventory, Kp, TB)

    grid = (Bp // TB,)
    feat_slab, value_slab = pl.pallas_call(
        _state_value_kernel,
        grid=grid,
        in_specs=[
            pl.BlockSpec((TB, Kp), lambda i: (i, 0)),
            pl.BlockSpec((Kp, Hp), lambda i: (0, 0)),
            pl.BlockSpec((1, Hp), lambda i: (0, 0)),
            pl.BlockSpec((Hp, _LANE), lambda i: (0, 0)),
            pl.BlockSpec(memory_space=pltpu.MemorySpace.SMEM),
        ],
        out_specs=(
            pl.BlockSpec((TB, Hp), lambda i: (i, 0)),
            pl.BlockSpec((TB, _LANE), lambda i: (i, 0)),
        ),
        out_shape=(
            jax.ShapeDtypeStruct((Bp, Hp), jnp.float32),
            jax.ShapeDtypeStruct((Bp, _LANE), jnp.float32),
        ),
        compiler_params=pltpu.CompilerParams(
            dimension_semantics=("parallel",),         # independent batch tiles -> megacore
            vmem_limit_bytes=_VMEM_LIMIT,
        ),
    )(x, kparams["w_h"], kparams["b_h"], kparams["w_heads"], kparams["bias"])

    return feat_slab[:B, : kparams["hidden_dim"]], value_slab[:B, :1]


# ----------------------------- PPONetwork forward (glue) -----------------------------

def make_action_assignment(act_sizes, batch):
    """Static one-hot (total_actions, batch) matrix mapping each flat action to its state."""
    total = int(sum(act_sizes))
    m = np.zeros((total, batch), np.float32)
    off = 0
    for i, s in enumerate(act_sizes):
        m[off:off + s, i] = 1.0
        off += s
    return jnp.asarray(m)


def split_scores(scores, act_sizes):
    """Lazy per-action-list split, kept out of the device hot path."""
    out, off = [], 0
    for s in act_sizes:
        out.append(scores[off:off + s])
        off += s
    return out


def ppo_forward(kparams, obs_emb, desc_emb, inventory, act_sizes=None, act_emb=None):
    """Mirrors PPONetwork.forward given precomputed LM CLS embeddings.

    Returns (state_features, value) when act_sizes is None, else (flat_scores, value);
    use split_scores(flat_scores, act_sizes) if the per-state split is needed.
    """
    obs_emb = obs_emb.astype(jnp.float32)
    desc_emb = desc_emb.astype(jnp.float32)
    inventory = inventory.astype(jnp.float32)
    if act_sizes is None:
        return state_value_forward(kparams, obs_emb, desc_emb, inventory)
    B = obs_emb.shape[0]
    assign = make_action_assignment(act_sizes, B)
    return fused_forward(kparams, obs_emb, desc_emb, inventory,
                         act_emb.astype(jnp.float32), assign)


# ----------------------------- parameter init / prep -----------------------------

def init_params(key, embedding_dim, stats_dim, hidden_dim):
    """Torch-layout synthetic params (Linear as (in, out) for x @ W + b)."""
    din = 2 * embedding_dim + stats_dim
    k1, k2, k3 = jax.random.split(key, 3)
    bound_h = 1.0 / jnp.sqrt(din)
    w_h = jax.random.uniform(k1, (din, hidden_dim), jnp.float32, -bound_h, bound_h)
    b_h = jnp.zeros((1, hidden_dim), jnp.float32)
    w_v = 0.02 * jax.random.normal(k2, (hidden_dim, 1), jnp.float32)            # N(0, 0.02)
    b_v = jnp.zeros((1, 1), jnp.float32)
    w_p = jax.random.normal(k3, (hidden_dim + embedding_dim, 1), jnp.float32)   # N(0, 1)
    b_p = jnp.zeros((1, 1), jnp.float32)
    return {"w_h": w_h, "b_h": b_h, "w_v": w_v, "b_v": b_v, "w_p": w_p, "b_p": b_p}


def prepare_kernel_params(params, embedding_dim, stats_dim, lane=_LANE):
    """One-time host-side prep:
       - merge/pad W_h into a single (Kp, Hp) bf16 slab (K = concat input dim -> 128 mult),
       - pack both 1-wide heads into one (Hp, lane) bf16 slab (lane0=value, lane1=policy-state),
       - pack the action part of the policy head into a (Ep, lane) bf16 slab (lane1),
       - scalar biases into a 1-D f32 SMEM array [b_v, b_p]."""
    E, S = embedding_dim, stats_dim
    w_h, b_h = params["w_h"], params["b_h"]
    w_v, b_v = params["w_v"], params["b_v"]
    w_p, b_p = params["w_p"], params["b_p"]
    Din = 2 * E + S
    H = w_h.shape[1]
    Kp = _round_up(Din, lane)
    Hp = _round_up(H, lane)
    Ep = _round_up(E, lane)

    w_h_p = jnp.zeros((Kp, Hp), jnp.float32).at[:Din, :H].set(w_h).astype(jnp.bfloat16)
    b_h_p = jnp.zeros((1, Hp), jnp.float32).at[:, :H].set(b_h)

    w_heads = jnp.zeros((Hp, lane), jnp.float32)
    w_heads = (w_heads.at[:H, 0].set(w_v[:, 0])          # lane 0: value head
                        .at[:H, 1].set(w_p[:H, 0])       # lane 1: policy head (state part)
               ).astype(jnp.bfloat16)

    w_pa = jnp.zeros((Ep, lane), jnp.float32).at[:E, 1].set(w_p[H:H + E, 0]).astype(jnp.bfloat16)

    bias = jnp.array([b_v[0, 0], b_p[0, 0]], jnp.float32)   # SMEM scalars

    return {"w_h": w_h_p, "b_h": b_h_p, "w_heads": w_heads, "w_pa": w_pa, "bias": bias,
            "hidden_dim": H, "kp": Kp, "hp": Hp, "ep": Ep}


# ----------------------------- main -----------------------------

if __name__ == "__main__":
    B = 2            # batch of states
    E = 32           # LM embedding_dim (hidden_size)
    STATS = 8        # stats_dim
    H = 32           # hidden_dim
    act_sizes = [3, 2]
    A = sum(act_sizes)

    key = jax.random.PRNGKey(0)
    kp_, ko, kd, ki, ka = jax.random.split(key, 5)

    params = init_params(kp_, E, STATS, H)
    kparams = prepare_kernel_params(params, E, STATS)

    obs_emb = jax.random.normal(ko, (B, E), jnp.float32)
    desc_emb = jax.random.normal(kd, (B, E), jnp.float32)
    inventory = jax.random.normal(ki, (B, STATS), jnp.float32)
    act_emb = jax.random.normal(ka, (A, E), jnp.float32)

    # actions path (fused kernel)
    scores, value = ppo_forward(kparams, obs_emb, desc_emb, inventory,
                                act_sizes=act_sizes, act_emb=act_emb)
    scores = jax.block_until_ready(scores)
    value = jax.block_until_ready(value)

    # no-actions path (state_features + value)
    feat_sv, value_sv = ppo_forward(kparams, obs_emb, desc_emb, inventory)
    feat_sv = jax.block_until_ready(feat_sv)
    value_sv = jax.block_until_ready(value_sv)

    # --- matched-precision reference (bf16 MXU operands, f32 accumulation) ---
    x_full = jnp.concatenate([obs_emb, desc_emb, inventory], axis=1)
    xb = x_full.astype(jnp.bfloat16)
    whb = params["w_h"].astype(jnp.bfloat16)
    feat_m = jnp.maximum(jnp.dot(xb, whb, preferred_element_type=jnp.float32) + params["b_h"], 0.0)
    fb = feat_m.astype(jnp.bfloat16)
    val_m = jnp.dot(fb, params["w_v"].astype(jnp.bfloat16),
                    preferred_element_type=jnp.float32) + params["b_v"]
    s_state_m = jnp.dot(fb, params["w_p"][:H].astype(jnp.bfloat16),
                        preferred_element_type=jnp.float32)
    t_act_m = jnp.dot(act_emb.astype(jnp.bfloat16), params["w_p"][H:H + E].astype(jnp.bfloat16),
                      preferred_element_type=jnp.float32)
    rep_m = jnp.repeat(s_state_m, jnp.asarray(act_sizes), axis=0, total_repeat_length=A)
    scores_m = (rep_m + t_act_m + params["b_p"])[:, 0]

    assert jnp.allclose(value, val_m, atol=1e-3, rtol=1e-3)
    assert jnp.allclose(scores, scores_m, atol=1e-3, rtol=1e-3)
    assert jnp.allclose(value_sv, val_m, atol=1e-3, rtol=1e-3)
    assert jnp.allclose(feat_sv, feat_m, atol=1e-3, rtol=1e-3)

    # --- loose sanity check vs pure-f32 reference (bf16 operand rounding expected) ---
    feat_f = jnp.maximum(x_full @ params["w_h"] + params["b_h"], 0.0)
    val_f = feat_f @ params["w_v"] + params["b_v"]
    exp_f = jnp.repeat(feat_f, jnp.asarray(act_sizes), axis=0, total_repeat_length=A)
    scores_f = (jnp.concatenate([exp_f, act_emb], axis=1) @ params["w_p"] + params["b_p"])[:, 0]
    assert jnp.allclose(value, val_f, atol=5e-2, rtol=5e-2)
    assert jnp.allclose(scores, scores_f, atol=2e-1, rtol=5e-2)
    assert jnp.allclose(feat_sv, feat_f, atol=5e-2, rtol=5e-2)

    # optional per-action-list split, done lazily outside the device hot path
    _ = split_scores(scores, act_sizes)

    print("KERNEL_OK")
</pallas_src>

<mosaic_0001>
module attributes {stable_mosaic.version = 11 : i64} {
  func.func @_ppo_fused_kernel(%arg0: i32, %arg1: memref<8x128xbf16, #tpu.memory_space<vmem>>, %arg2: memref<128x128xbf16, #tpu.memory_space<vmem>>, %arg3: memref<1x128xf32, #tpu.memory_space<vmem>>, %arg4: memref<128x128xbf16, #tpu.memory_space<vmem>>, %arg5: memref<8x8xf32, #tpu.memory_space<vmem>>, %arg6: memref<8x128xbf16, #tpu.memory_space<vmem>>, %arg7: memref<128x128xbf16, #tpu.memory_space<vmem>>, %arg8: memref<2xf32, #tpu.memory_space<smem>>, %arg9: memref<8x128xf32, #tpu.memory_space<vmem>>, %arg10: memref<8x128xf32, #tpu.memory_space<vmem>>) attributes {dimension_semantics = [#tpu.dimension_semantics<arbitrary>], iteration_bounds = array<i64: 1>, scalar_prefetch = 0 : i64, scratch_operands = 0 : i64, tpu.core_type = #tpu.core_type<tc>, window_params = [{transform_indices = @transform_0, window_bounds = array<i64: 8, 128>}, {pipeline_mode = #tpu.pipeline_mode<synchronous>, transform_indices = @transform_1, window_bounds = array<i64: 128, 128>}, {pipeline_mode = #tpu.pipeline_mode<synchronous>, transform_indices = @transform_2, window_bounds = array<i64: 1, 128>}, {pipeline_mode = #tpu.pipeline_mode<synchronous>, transform_indices = @transform_3, window_bounds = array<i64: 128, 128>}, {transform_indices = @transform_4, window_bounds = array<i64: 8, 8>}, {pipeline_mode = #tpu.pipeline_mode<synchronous>, transform_indices = @transform_5, window_bounds = array<i64: 8, 128>}, {pipeline_mode = #tpu.pipeline_mode<synchronous>, transform_indices = @transform_6, window_bounds = array<i64: 128, 128>}, {transform_indices = @transform_7, window_bounds = array<i64: 2>}, {transform_indices = @transform_8, window_bounds = array<i64: 8, 128>}, {pipeline_mode = #tpu.pipeline_mode<synchronous>, transform_indices = @transform_9, window_bounds = array<i64: 8, 128>}]} {
    %c0 = arith.constant 0 : index
    %c0_0 = arith.constant 0 : index
    %0 = vector.load %arg1[%c0, %c0_0] : memref<8x128xbf16, #tpu.memory_space<vmem>>, vector<8x128xbf16>
    %c0_1 = arith.constant 0 : index
    %c0_2 = arith.constant 0 : index
    %1 = vector.load %arg2[%c0_1, %c0_2] : memref<128x128xbf16, #tpu.memory_space<vmem>>, vector<128x128xbf16>
    %cst = arith.constant dense<0.000000e+00> : vector<8x128xf32>
    %2 = tpu.matmul %0, %1, %cst {dimension_numbers = #tpu.dot_dimension_numbers<[1], [0], [0], [1], [0, 0, 1, 1], [], []>} : vector<8x128xbf16>, vector<128x128xbf16>, vector<8x128xf32> -> vector<8x128xf32>
    %c0_3 = arith.constant 0 : index
    %c0_4 = arith.constant 0 : index
    %3 = vector.load %arg3[%c0_3, %c0_4] : memref<1x128xf32, #tpu.memory_space<vmem>>, vector<1x128xf32>
    %4 = vector.broadcast %3 : vector<1x128xf32> to vector<8x128xf32>
    %5 = arith.addf %2, %4 : vector<8x128xf32>
    %cst_5 = arith.constant 0.000000e+00 : f32
    %6 = vector.broadcast %cst_5 : f32 to vector<8x128xf32>
    %7 = arith.maximumf %5, %6 : vector<8x128xf32>
    %8 = arith.truncf %7 : vector<8x128xf32> to vector<8x128xbf16>
    %c0_6 = arith.constant 0 : index
    %c0_7 = arith.constant 0 : index
    %9 = vector.load %arg4[%c0_6, %c0_7] : memref<128x128xbf16, #tpu.memory_space<vmem>>, vector<128x128xbf16>
    %cst_8 = arith.constant dense<0.000000e+00> : vector<8x128xf32>
    %10 = tpu.matmul %8, %9, %cst_8 {dimension_numbers = #tpu.dot_dimension_numbers<[1], [0], [0], [1], [0, 0, 1, 1], [], []>} : vector<8x128xbf16>, vector<128x128xbf16>, vector<8x128xf32> -> vector<8x128xf32>
    %c0_9 = arith.constant 0 : index
    %11 = memref.load %arg8[%c0_9] : memref<2xf32, #tpu.memory_space<smem>>
    %12 = vector.broadcast %11 : f32 to vector<8x128xf32>
    %13 = arith.addf %10, %12 : vector<8x128xf32>
    %c0_10 = arith.constant 0 : index
    %c0_11 = arith.constant 0 : index
    %14 = vector.load %arg9[%c0_10, %c0_11] : memref<8x128xf32, #tpu.memory_space<vmem>>, vector<8x128xf32>
    tpu.vector_store %arg9[%c0_10, %c0_11], %13 {strides = array<i32>} : memref<8x128xf32, #tpu.memory_space<vmem>>, vector<8x128xf32>,
    %c0_i32 = arith.constant 0 : i32
    %15 = arith.cmpi eq, %arg0, %c0_i32 : i32
    %16 = arith.extui %15 : i1 to i32
    %c0_i32_12 = arith.constant 0 : i32
    %17 = arith.cmpi ne, %16, %c0_i32_12 : i32
    scf.if %17 {
      %c0_20 = arith.constant 0 : index
      %c0_21 = arith.constant 0 : index
      %23 = vector.load %arg6[%c0_20, %c0_21] : memref<8x128xbf16, #tpu.memory_space<vmem>>, vector<8x128xbf16>
      %c0_22 = arith.constant 0 : index
      %c0_23 = arith.constant 0 : index
      %24 = vector.load %arg7[%c0_22, %c0_23] : memref<128x128xbf16, #tpu.memory_space<vmem>>, vector<128x128xbf16>
      %cst_24 = arith.constant dense<0.000000e+00> : vector<8x128xf32>
      %25 = tpu.matmul %23, %24, %cst_24 {dimension_numbers = #tpu.dot_dimension_numbers<[1], [0], [0], [1], [0, 0, 1, 1], [], []>} : vector<8x128xbf16>, vector<128x128xbf16>, vector<8x128xf32> -> vector<8x128xf32>
      %c1 = arith.constant 1 : index
      %26 = memref.load %arg8[%c1] : memref<2xf32, #tpu.memory_space<smem>>
      %27 = vector.broadcast %26 : f32 to vector<8x128xf32>
      %28 = arith.addf %25, %27 : vector<8x128xf32>
      %c0_25 = arith.constant 0 : index
      %c0_26 = arith.constant 0 : index
      %29 = vector.load %arg10[%c0_25, %c0_26] : memref<8x128xf32, #tpu.memory_space<vmem>>, vector<8x128xf32>
      tpu.vector_store %arg10[%c0_25, %c0_26], %28 {strides = array<i32>} : memref<8x128xf32, #tpu.memory_space<vmem>>, vector<8x128xf32>,
    } else {
    }
    %c0_13 = arith.constant 0 : index
    %c0_14 = arith.constant 0 : index
    %18 = vector.load %arg10[%c0_13, %c0_14] : memref<8x128xf32, #tpu.memory_space<vmem>>, vector<8x128xf32>
    %c0_15 = arith.constant 0 : index
    %c0_16 = arith.constant 0 : index
    %19 = vector.load %arg5[%c0_15, %c0_16] : memref<8x8xf32, #tpu.memory_space<vmem>>, vector<8x8xf32>
    %cst_17 = arith.constant dense<0.000000e+00> : vector<8x128xf32>
    %20 = tpu.matmul %19, %10, %cst_17 {dimension_numbers = #tpu.dot_dimension_numbers<[1], [0], [0], [1], [0, 0, 1, 1], [], []>} : vector<8x8xf32>, vector<8x128xf32>, vector<8x128xf32> -> vector<8x128xf32>
    %21 = arith.addf %18, %20 : vector<8x128xf32>
    %c0_18 = arith.constant 0 : index
    %c0_19 = arith.constant 0 : index
    %22 = vector.load %arg10[%c0_18, %c0_19] : memref<8x128xf32, #tpu.memory_space<vmem>>, vector<8x128xf32>
    tpu.vector_store %arg10[%c0_18, %c0_19], %21 {strides = array<i32>} : memref<8x128xf32, #tpu.memory_space<vmem>>, vector<8x128xf32>,
    return
  }
  func.func @transform_0(%arg0: i32) -> (i32, i32) {
    %c0_i32 = arith.constant 0 : i32
    %c0_i32_0 = arith.constant 0 : i32
    return %arg0, %c0_i32 : i32, i32
  }
  func.func @transform_1(%arg0: i32) -> (i32, i32) {
    %c0_i32 = arith.constant 0 : i32
    %c0_i32_0 = arith.constant 0 : i32
    %c0_i32_1 = arith.constant 0 : i32
    return %c0_i32, %c0_i32_0 : i32, i32
  }
  func.func @transform_2(%arg0: i32) -> (i32, i32) {
    %c0_i32 = arith.constant 0 : i32
    %c0_i32_0 = arith.constant 0 : i32
    %c0_i32_1 = arith.constant 0 : i32
    return %c0_i32, %c0_i32_0 : i32, i32
  }
  func.func @transform_3(%arg0: i32) -> (i32, i32) {
    %c0_i32 = arith.constant 0 : i32
    %c0_i32_0 = arith.constant 0 : i32
    %c0_i32_1 = arith.constant 0 : i32
    return %c0_i32, %c0_i32_0 : i32, i32
  }
  func.func @transform_4(%arg0: i32) -> (i32, i32) {
    %c0_i32 = arith.constant 0 : i32
    %c0_i32_0 = arith.constant 0 : i32
    return %c0_i32, %arg0 : i32, i32
  }
  func.func @transform_5(%arg0: i32) -> (i32, i32) {
    %c0_i32 = arith.constant 0 : i32
    %c0_i32_0 = arith.constant 0 : i32
    %c0_i32_1 = arith.constant 0 : i32
    return %c0_i32, %c0_i32_0 : i32, i32
  }
  func.func @transform_6(%arg0: i32) -> (i32, i32) {
    %c0_i32 = arith.constant 0 : i32
    %c0_i32_0 = arith.constant 0 : i32
    %c0_i32_1 = arith.constant 0 : i32
    return %c0_i32, %c0_i32_0 : i32, i32
  }
  func.func @transform_7(%arg0: i32) -> i32 {
    %c0_i32 = arith.constant 0 : i32
    %c0_i32_0 = arith.constant 0 : i32
    return %c0_i32 : i32
  }
  func.func @transform_8(%arg0: i32) -> (i32, i32) {
    %c0_i32 = arith.constant 0 : i32
    %c0_i32_0 = arith.constant 0 : i32
    return %arg0, %c0_i32 : i32, i32
  }
  func.func @transform_9(%arg0: i32) -> (i32, i32) {
    %c0_i32 = arith.constant 0 : i32
    %c0_i32_0 = arith.constant 0 : i32
    %c0_i32_1 = arith.constant 0 : i32
    return %c0_i32, %c0_i32_0 : i32, i32
  }
}

</mosaic_0001>

<llo_original>
// kernel: tpu_custom_call.1
$region0: #{tpu_custom_call.1}
  #allocation0 [shape = 'u32[]', space=smem, size = 0x4, offset = 0x4, fixed_abs, tag = 'smem constant byte address 0x4 - core index']
  #allocation1 [shape = 'u32[144,128]{1,0:T(1,128)}', space=vmem, size = 0x12000, scoped, tag = 'internal scratch']
  %s0 = inlined_call_operand.hbm [shape: bf16[8,128], index: 0, kind: input, shape index: {}]
  %s1 = inlined_call_operand.hbm [shape: bf16[128,128], index: 1, kind: input, shape index: {}]
  %s2 = inlined_call_operand.vmem [shape: f32[1,128], index: 2, kind: input, shape index: {}]
  %s3 = inlined_call_operand.hbm [shape: bf16[128,128], index: 3, kind: input, shape index: {}]
  %s4 = inlined_call_operand.hbm [shape: f32[8,8], index: 4, kind: input, shape index: {}]
  %s5 = inlined_call_operand.vmem [shape: bf16[8,128], index: 5, kind: input, shape index: {}]
  %s6 = inlined_call_operand.hbm [shape: bf16[128,128], index: 6, kind: input, shape index: {}]
  %s7 = inlined_call_operand.vmem [shape: f32[2], index: 7, kind: input, shape index: {}]
  %s8 = inlined_call_operand.hbm [shape: f32[8,128], index: 8, kind: output, shape index: {0}]
  %s9 = inlined_call_operand.hbm [shape: f32[8,128], index: 9, kind: output, shape index: {1}]
  %10 = xla_tuple %s8, %s9
  %s11 = sld [smem:[#allocation0]]
  $region78: #{tpu_custom_call.1} parent=0
    _
  %s13 = ssub.s32 1, %s11
  %s14 = scalar_select 0, %s13, %s11
  $region1: #{tpu_custom_call.1} parent=0
    #allocation2 [shape = 'u8[2048]{0}', space=vmem, size = 0x800, scoped, tag = 'input window, operand 0, single buffered']
    #allocation3 [shape = 's32[1]{0}', space=sflag, size = 0x4, scoped, tag = 'scoped memory for tpu_custom_call.1']
    #allocation4 [shape = 's32[1]{0}', space=sflag, size = 0x4, scoped, tag = 'scoped memory for tpu_custom_call.1']
    #allocation5 [shape = 's32[1]{0}', space=sflag, size = 0x4, scoped, tag = 'scoped memory for tpu_custom_call.1']
    #allocation6 [shape = 'u8[32768]{0}', space=vmem, size = 0x8000, scoped, tag = 'input window, operand 1, single buffered']
    #allocation7 [shape = 's32[1]{0}', space=sflag, size = 0x4, scoped, tag = 'scoped memory for tpu_custom_call.1']
    #allocation8 [shape = 'u8[32768]{0}', space=vmem, size = 0x8000, scoped, tag = 'input window, operand 3, single buffered']
    #allocation9 [shape = 'u8[4096]{0}', space=vmem, size = 0x1000, scoped, tag = 'input window, operand 4, single buffered']
    #allocation10 [shape = 's32[1]{0}', space=sflag, size = 0x4, scoped, tag = 'scoped memory for tpu_custom_call.1']
    #allocation11 [shape = 'u8[32768]{0}', space=vmem, size = 0x8000, scoped, tag = 'input window, operand 6, single buffered']
    #allocation12 [shape = 'u8[512]{0}', space=smem, size = 0x200, scoped, tag = 'input window, operand 7, single buffered']
    #allocation13 [shape = 'u8[4096]{0}', space=vmem, size = 0x1000, scoped, tag = 'output window, operand 0, single buffered']
    #allocation14 [shape = 'u8[4096]{0}', space=vmem, size = 0x1000, scoped, tag = 'output window, operand 1, single buffered']
    #allocation15 [shape = 's32[1]{0}', space=sflag, size = 0x4, scoped, tag = 'scoped memory for tpu_custom_call.1']
    %15 = vsyncpa [#allocation3], 0
    %16 = vsyncpa [#allocation7], 0
    %17 = vsyncpa [#allocation10], 0
    %18 = vsyncpa [#allocation5], 0
    %19 = vsyncpa [#allocation4], 0
    %20 = vsyncpa [#allocation15], 0
    // Predicated region
    $region2: #{tpu_custom_call.1} parent=1 // pred_check
      _
    $region3: #{tpu_custom_call.1} parent=1 // pred_check_branch
      %22 = sbr.rel (0) target = $region5
    $region4: #{tpu_custom_call.1} parent=1 // pred_region
      %s24 = ssub.s32 64, 64
      %25 = vsyncadd [#allocation3], %s24
      %s27 = sshll.u32 [#allocation2], 4
      %s28 = int_to_ptr.vmem [resolvable:$true] %s27
      %30 = dma.hbm_to_vmem [thread:$0]  %s0, 64, %s28, [#allocation3]
    $region5: #{tpu_custom_call.1} parent=1 // pred_fallthru
      _
    // Predicated region
    $region6: #{tpu_custom_call.1} parent=1 // pred_check
      _
    $region7: #{tpu_custom_call.1} parent=1 // pred_check_branch
      %32 = sbr.rel (0) target = $region9
    $region8: #{tpu_custom_call.1} parent=1 // pred_region
      %s34 = ssub.s32 1024, 1024
      %35 = vsyncadd [#allocation7], %s34
      %s36 = sshll.u32 [#allocation6], 4
      %s37 = int_to_ptr.vmem [resolvable:$true] %s36
      %42 = dma.hbm_to_vmem [thread:$0]  %s1, 1024, %s37, [#allocation7], 64, 64, 4
    $region9: #{tpu_custom_call.1} parent=1 // pred_fallthru
      _
    // Predicated region
    $region10: #{tpu_custom_call.1} parent=1 // pred_check
      _
    $region11: #{tpu_custom_call.1} parent=1 // pred_check_branch
      %44 = sbr.rel (0) target = $region13
    $region12: #{tpu_custom_call.1} parent=1 // pred_region
      _
    $region13: #{tpu_custom_call.1} parent=1 // pred_fallthru
      _
    // Predicated region
    $region14: #{tpu_custom_call.1} parent=1 // pred_check
      _
    $region15: #{tpu_custom_call.1} parent=1 // pred_check_branch
      %46 = sbr.rel (0) target = $region17
    $region16: #{tpu_custom_call.1} parent=1 // pred_region
      %s48 = ssub.s32 1024, 1024
      %49 = vsyncadd [#allocation7], %s48
      %s50 = sshll.u32 [#allocation8], 4
      %s51 = int_to_ptr.vmem [resolvable:$true] %s50
      %56 = dma.hbm_to_vmem [thread:$0]  %s3, 1024, %s51, [#allocation7], 64, 64, 4
    $region17: #{tpu_custom_call.1} parent=1 // pred_fallthru
      _
    // Predicated region
    $region18: #{tpu_custom_call.1} parent=1 // pred_check
      _
    $region19: #{tpu_custom_call.1} parent=1 // pred_check_branch
      %58 = sbr.rel (0) target = $region21
    $region20: #{tpu_custom_call.1} parent=1 // pred_region
      %s60 = ssub.s32 128, 128
      %61 = vsyncadd [#allocation10], %s60
      %s63 = sshll.u32 [#allocation9], 4
      %s64 = int_to_ptr.vmem [resolvable:$true] %s63
      %66 = dma.hbm_to_vmem [thread:$0]  %s4, 128, %s64, [#allocation10]
    $region21: #{tpu_custom_call.1} parent=1 // pred_fallthru
      _
    // Predicated region
    $region22: #{tpu_custom_call.1} parent=1 // pred_check
      _
    $region23: #{tpu_custom_call.1} parent=1 // pred_check_branch
      %68 = sbr.rel (0) target = $region25
    $region24: #{tpu_custom_call.1} parent=1 // pred_region
      _
    $region25: #{tpu_custom_call.1} parent=1 // pred_fallthru
      _
    // Predicated region
    $region26: #{tpu_custom_call.1} parent=1 // pred_check
      _
    $region27: #{tpu_custom_call.1} parent=1 // pred_check_branch
      %70 = sbr.rel (0) target = $region29
    $region28: #{tpu_custom_call.1} parent=1 // pred_region
      %s72 = ssub.s32 1024, 1024
      %73 = vsyncadd [#allocation10], %s72
      %s74 = sshll.u32 [#allocation11], 4
      %s75 = int_to_ptr.vmem [resolvable:$true] %s74
      %80 = dma.hbm_to_vmem [thread:$0]  %s6, 1024, %s75, [#allocation10], 64, 64, 4
    $region29: #{tpu_custom_call.1} parent=1 // pred_fallthru
      _
    // Predicated region
    $region30: #{tpu_custom_call.1} parent=1 // pred_check
      _
    $region31: #{tpu_custom_call.1} parent=1 // pred_check_branch
      %82 = sbr.rel (0) target = $region33
    $region32: #{tpu_custom_call.1} parent=1 // pred_region
      %s84 = ssub.s32 16, 16
      %85 = vsyncadd [#allocation5], %s84
      %s87 = sshll.u32 %s7, 4
      %s88 = int_to_ptr.vmem [resolvable:$true] %s87
      %90 = dma.vmem_to_smem %s88, 16, [#allocation12], [#allocation5]
    $region33: #{tpu_custom_call.1} parent=1 // pred_fallthru
      _
    // Predicated region
    $region34: #{tpu_custom_call.1} parent=1 // pred_check
      _
    $region35: #{tpu_custom_call.1} parent=1 // pred_check_branch
      %92 = sbr.rel (0) target = $region37
    $region36: #{tpu_custom_call.1} parent=1 // pred_region
      %93 = dma.done [#allocation3], 64
    $region37: #{tpu_custom_call.1} parent=1 // pred_fallthru
      _
    // Predicated region
    $region38: #{tpu_custom_call.1} parent=1 // pred_check
      _
    $region39: #{tpu_custom_call.1} parent=1 // pred_check_branch
      %95 = sbr.rel (0) target = $region41
    $region40: #{tpu_custom_call.1} parent=1 // pred_region
      %96 = dma.done [#allocation7], 1024
    $region41: #{tpu_custom_call.1} parent=1 // pred_fallthru
      _
    // Predicated region
    $region42: #{tpu_custom_call.1} parent=1 // pred_check
      _
    $region43: #{tpu_custom_call.1} parent=1 // pred_check_branch
      %98 = sbr.rel (0) target = $region45
    $region44: #{tpu_custom_call.1} parent=1 // pred_region
      %99 = dma.done [#allocation7], 1024
    $region45: #{tpu_custom_call.1} parent=1 // pred_fallthru
      _
    // Predicated region
    $region46: #{tpu_custom_call.1} parent=1 // pred_check
      _
    $region47: #{tpu_custom_call.1} parent=1 // pred_check_branch
      %101 = sbr.rel (0) target = $region49
    $region48: #{tpu_custom_call.1} parent=1 // pred_region
      %102 = dma.done [#allocation10], 128
    $region49: #{tpu_custom_call.1} parent=1 // pred_fallthru
      _
    // Predicated region
    $region50: #{tpu_custom_call.1} parent=1 // pred_check
      _
    $region51: #{tpu_custom_call.1} parent=1 // pred_check_branch
      %104 = sbr.rel (0) target = $region53
    $region52: #{tpu_custom_call.1} parent=1 // pred_region
      %105 = dma.done [#allocation10], 1024
    $region53: #{tpu_custom_call.1} parent=1 // pred_fallthru
      _
    // Predicated region
    $region54: #{tpu_custom_call.1} parent=1 // pred_check
      _
    $region55: #{tpu_custom_call.1} parent=1 // pred_check_branch
      %107 = sbr.rel (0) target = $region57
    $region56: #{tpu_custom_call.1} parent=1 // pred_region
      %108 = dma.done [#allocation5], 16
    $region57: #{tpu_custom_call.1} parent=1 // pred_fallthru
      _
    %109 = sfence
    %v111 = vld [vmem:[#allocation2] sm:$0xf]
    %v112 = vld [vmem:[#allocation6] sm:$0xf]
    %v113 = vld [vmem:[#allocation6 + $0x4] sm:$0xf]
    %v114 = vld [vmem:[#allocation6 + $0x8] sm:$0xf]
    %v115 = vld [vmem:[#allocation6 + $0xc] sm:$0xf]
    %v116 = vld [vmem:[#allocation6 + $0x10] sm:$0xf]
    %v117 = vld [vmem:[#allocation6 + $0x14] sm:$0xf]
    %v118 = vld [vmem:[#allocation6 + $0x18] sm:$0xf]
    %v119 = vld [vmem:[#allocation6 + $0x1c] sm:$0xf]
    %v120 = vld [vmem:[#allocation6 + $0x20] sm:$0xf]
    %v121 = vld [vmem:[#allocation6 + $0x24] sm:$0xf]
    %v122 = vld [vmem:[#allocation6 + $0x28] sm:$0xf]
    %v123 = vld [vmem:[#allocation6 + $0x2c] sm:$0xf]
    %v124 = vld [vmem:[#allocation6 + $0x30] sm:$0xf]
    %v125 = vld [vmem:[#allocation6 + $0x34] sm:$0xf]
    %v126 = vld [vmem:[#allocation6 + $0x38] sm:$0xf]
    %v127 = vld [vmem:[#allocation6 + $0x3c] sm:$0xf]
    %v128 = vld [vmem:[%s2] sm:$0x1]
    %v130 = vlaneseq
    %v131 = vshrl.u32 %v130, 7
    %v132 = vsub.s32 0, %v131
    %v133 = vrot.slane %v128, %v132
    %v151 = vunpack.c.l.b16 %v112
    %v152 = vunpack.c.l.b16 %v113
    %v153 = vunpack.c.l.b16 %v114
    %v154 = vunpack.c.l.b16 %v115
    %v155 = vunpack.c.l.b16 %v116
    %v156 = vunpack.c.l.b16 %v117
    %v157 = vunpack.c.l.b16 %v118
    %v158 = vunpack.c.l.b16 %v119
    %v159 = vunpack.c.l.b16 %v120
    %v160 = vunpack.c.l.b16 %v121
    %v161 = vunpack.c.l.b16 %v122
    %v162 = vunpack.c.l.b16 %v123
    %v163 = vunpack.c.l.b16 %v124
    %v164 = vunpack.c.l.b16 %v125
    %v165 = vunpack.c.l.b16 %v126
    %v166 = vunpack.c.l.b16 %v127
    %v167 = vpack.c.b16 %v152, %v151
    %v168 = vpack.c.b16 %v154, %v153
    %v169 = vpack.c.b16 %v156, %v155
    %v170 = vpack.c.b16 %v158, %v157
    %v171 = vpack.c.b16 %v160, %v159
    %v172 = vpack.c.b16 %v162, %v161
    %v173 = vpack.c.b16 %v164, %v163
    %v174 = vpack.c.b16 %v166, %v165
    %183 = vmatprep.subr.bf16.mxu0 0
    %184 = vmatpush1.bf16.msra.mxu0 %v174
    %185 = vmatprep.subr.bf16.mxu0 0
    %186 = vmatpush1.bf16.msra.mxu0 %v173
    %187 = vmatprep.subr.bf16.mxu0 0
    %188 = vmatpush1.bf16.msra.mxu0 %v172
    %189 = vmatprep.subr.bf16.mxu0 0
    %190 = vmatpush1.bf16.msra.mxu0 %v171
    %191 = vmatprep.subr.bf16.mxu0 0
    %192 = vmatpush1.bf16.msra.mxu0 %v170
    %193 = vmatprep.subr.bf16.mxu0 0
    %194 = vmatpush1.bf16.msra.mxu0 %v169
    %195 = vmatprep.subr.bf16.mxu0 0
    %196 = vmatpush1.bf16.msra.mxu0 %v168
    %197 = vmatprep.subr.bf16.mxu0 0
    %198 = vmatpush1.bf16.msra.mxu0 %v167
    %199 = vmatprep.subr.bf16.mxu0 0
    %200 = vmatpush2.bf16.msra.mxu0 0
    %201 = vmatprep.subr.bf16.mxu0 0
    %202 = vmatpush2.bf16.msra.mxu0 0
    %203 = vmatprep.subr.bf16.mxu0 0
    %204 = vmatpush2.bf16.msra.mxu0 0
    %205 = vmatprep.subr.bf16.mxu0 0
    %206 = vmatpush2.bf16.msra.mxu0 0
    %207 = vmatprep.subr.bf16.mxu0 0
    %208 = vmatpush2.bf16.msra.mxu0 0
    %209 = vmatprep.subr.bf16.mxu0 0
    %210 = vmatpush2.bf16.msra.mxu0 0
    %211 = vmatprep.subr.bf16.mxu0 0
    %212 = vmatpush2.bf16.msra.mxu0 0
    %213 = vmatprep.subr.bf16.mxu0 0
    %214 = vmatpush2.bf16.msra.mxu0 0
    %215 = vmatprep.mubr.bf16.mxu0 0
    %216 = vmatmul.mubr.bf16.gmra.mxu0 %v111
    %v217 = vpop.f32.mrf.mxu0
    %v218 = vadd.f32 %v133, %v217
    %v219 = vpop.f32.mrf.mxu0
    %v220 = vpop.f32.mrf.mxu0
    %v221 = vpop.f32.mrf.mxu0
    %222 = vdwg.mxu0
    %v223 = vmax.f32 %v218, 0.0
    %v224 = vpack.c.bf16 %v223, %v223
    %v225 = vld [vmem:[#allocation8] sm:$0xf]
    %v226 = vld [vmem:[#allocation8 + $0x4] sm:$0xf]
    %v227 = vld [vmem:[#allocation8 + $0x8] sm:$0xf]
    %v228 = vld [vmem:[#allocation8 + $0xc] sm:$0xf]
    %v229 = vld [vmem:[#allocation8 + $0x10] sm:$0xf]
    %v230 = vld [vmem:[#allocation8 + $0x14] sm:$0xf]
    %v231 = vld [vmem:[#allocation8 + $0x18] sm:$0xf]
    %v232 = vld [vmem:[#allocation8 + $0x1c] sm:$0xf]
    %v233 = vld [vmem:[#allocation8 + $0x20] sm:$0xf]
    %v234 = vld [vmem:[#allocation8 + $0x24] sm:$0xf]
    %v235 = vld [vmem:[#allocation8 + $0x28] sm:$0xf]
    %v236 = vld [vmem:[#allocation8 + $0x2c] sm:$0xf]
    %v237 = vld [vmem:[#allocation8 + $0x30] sm:$0xf]
    %v238 = vld [vmem:[#allocation8 + $0x34] sm:$0xf]
    %v239 = vld [vmem:[#allocation8 + $0x38] sm:$0xf]
    %v240 = vld [vmem:[#allocation8 + $0x3c] sm:$0xf]
    %v257 = vunpack.c.l.b16 %v225
    %v258 = vunpack.c.l.b16 %v226
    %v259 = vunpack.c.l.b16 %v227
    %v260 = vunpack.c.l.b16 %v228
    %v261 = vunpack.c.l.b16 %v229
    %v262 = vunpack.c.l.b16 %v230
    %v263 = vunpack.c.l.b16 %v231
    %v264 = vunpack.c.l.b16 %v232
    %v265 = vunpack.c.l.b16 %v233
    %v266 = vunpack.c.l.b16 %v234
    %v267 = vunpack.c.l.b16 %v235
    %v268 = vunpack.c.l.b16 %v236
    %v269 = vunpack.c.l.b16 %v237
    %v270 = vunpack.c.l.b16 %v238
    %v271 = vunpack.c.l.b16 %v239
    %v272 = vunpack.c.l.b16 %v240
    %v273 = vpack.c.b16 %v258, %v257
    %v274 = vpack.c.b16 %v260, %v259
    %v275 = vpack.c.b16 %v262, %v261
    %v276 = vpack.c.b16 %v264, %v263
    %v277 = vpack.c.b16 %v266, %v265
    %v278 = vpack.c.b16 %v268, %v267
    %v279 = vpack.c.b16 %v270, %v269
    %v280 = vpack.c.b16 %v272, %v271
    %289 = vmatprep.subr.bf16.mxu0 0
    %290 = vmatpush1.bf16.msra.mxu0 %v280
    %291 = vmatprep.subr.bf16.mxu0 0
    %292 = vmatpush1.bf16.msra.mxu0 %v279
    %293 = vmatprep.subr.bf16.mxu0 0
    %294 = vmatpush1.bf16.msra.mxu0 %v278
    %295 = vmatprep.subr.bf16.mxu0 0
    %296 = vmatpush1.bf16.msra.mxu0 %v277
    %297 = vmatprep.subr.bf16.mxu0 0
    %298 = vmatpush1.bf16.msra.mxu0 %v276
    %299 = vmatprep.subr.bf16.mxu0 0
    %300 = vmatpush1.bf16.msra.mxu0 %v275
    %301 = vmatprep.subr.bf16.mxu0 0
    %302 = vmatpush1.bf16.msra.mxu0 %v274
    %303 = vmatprep.subr.bf16.mxu0 0
    %304 = vmatpush1.bf16.msra.mxu0 %v273
    %305 = vmatprep.subr.bf16.mxu0 0
    %306 = vmatpush2.bf16.msra.mxu0 0
    %307 = vmatprep.subr.bf16.mxu0 0
    %308 = vmatpush2.bf16.msra.mxu0 0
    %309 = vmatprep.subr.bf16.mxu0 0
    %310 = vmatpush2.bf16.msra.mxu0 0
    %311 = vmatprep.subr.bf16.mxu0 0
    %312 = vmatpush2.bf16.msra.mxu0 0
    %313 = vmatprep.subr.bf16.mxu0 0
    %314 = vmatpush2.bf16.msra.mxu0 0
    %315 = vmatprep.subr.bf16.mxu0 0
    %316 = vmatpush2.bf16.msra.mxu0 0
    %317 = vmatprep.subr.bf16.mxu0 0
    %318 = vmatpush2.bf16.msra.mxu0 0
    %319 = vmatprep.subr.bf16.mxu0 0
    %320 = vmatpush2.bf16.msra.mxu0 0
    %321 = vmatprep.mubr.bf16.mxu0 0
    %322 = vmatmul.mubr.bf16.gmra.mxu0 %v224
    %v323 = vpop.f32.mrf.mxu0
    %v324 = vadd.f32 0.0, %v323
    %v325 = vpop.f32.mrf.mxu0
    %v326 = vpop.f32.mrf.mxu0
    %v327 = vpop.f32.mrf.mxu0
    %328 = vdwg.mxu0
    %s329 = sld [smem:[#allocation12]]
    %v330 = vstv %s329
    %v331 = vadd.f32 %v324, %v330
    %332 = vst [vmem:[#allocation13] sm:$0xff] %v331
    %p333 = scmp.eq.s32.totalorder 0, 0
    // Predicated region
    $region58: #{tpu_custom_call.1} parent=1 // pred_check
      %p334 = pneg %p333
    $region59: #{tpu_custom_call.1} parent=1 // pred_check_branch
      %336 = sbr.rel (%p334) target = $region61
    $region60: #{tpu_custom_call.1} parent=1 // pred_region
      %v337 = vld [vmem:[%s5] sm:$0xf]
      %v338 = vld [vmem:[#allocation11] sm:$0xf]
      %v339 = vld [vmem:[#allocation11 + $0x4] sm:$0xf]
      %v340 = vld [vmem:[#allocation11 + $0x8] sm:$0xf]
      %v341 = vld [vmem:[#allocation11 + $0xc] sm:$0xf]
      %v342 = vld [vmem:[#allocation11 + $0x10] sm:$0xf]
      %v343 = vld [vmem:[#allocation11 + $0x14] sm:$0xf]
      %v344 = vld [vmem:[#allocation11 + $0x18] sm:$0xf]
      %v345 = vld [vmem:[#allocation11 + $0x1c] sm:$0xf]
      %v346 = vld [vmem:[#allocation11 + $0x20] sm:$0xf]
      %v347 = vld [vmem:[#allocation11 + $0x24] sm:$0xf]
      %v348 = vld [vmem:[#allocation11 + $0x28] sm:$0xf]
      %v349 = vld [vmem:[#allocation11 + $0x2c] sm:$0xf]
      %v350 = vld [vmem:[#allocation11 + $0x30] sm:$0xf]
      %v351 = vld [vmem:[#allocation11 + $0x34] sm:$0xf]
      %v352 = vld [vmem:[#allocation11 + $0x38] sm:$0xf]
      %v353 = vld [vmem:[#allocation11 + $0x3c] sm:$0xf]
      %s354 = sld [smem:[#allocation12 + $0x1]]
      %v355 = vstv %s354
      %v372 = vunpack.c.l.b16 %v338
      %v373 = vunpack.c.l.b16 %v339
      %v374 = vunpack.c.l.b16 %v340
      %v375 = vunpack.c.l.b16 %v341
      %v376 = vunpack.c.l.b16 %v342
      %v377 = vunpack.c.l.b16 %v343
      %v378 = vunpack.c.l.b16 %v344
      %v379 = vunpack.c.l.b16 %v345
      %v380 = vunpack.c.l.b16 %v346
      %v381 = vunpack.c.l.b16 %v347
      %v382 = vunpack.c.l.b16 %v348
      %v383 = vunpack.c.l.b16 %v349
      %v384 = vunpack.c.l.b16 %v350
      %v385 = vunpack.c.l.b16 %v351
      %v386 = vunpack.c.l.b16 %v352
      %v387 = vunpack.c.l.b16 %v353
      %v388 = vpack.c.b16 %v373, %v372
      %v389 = vpack.c.b16 %v375, %v374
      %v390 = vpack.c.b16 %v377, %v376
      %v391 = vpack.c.b16 %v379, %v378
      %v392 = vpack.c.b16 %v381, %v380
      %v393 = vpack.c.b16 %v383, %v382
      %v394 = vpack.c.b16 %v385, %v384
      %v395 = vpack.c.b16 %v387, %v386
      %404 = vmatprep.subr.bf16.mxu0 0
      %405 = vmatpush1.bf16.msra.mxu0 %v395
      %406 = vmatprep.subr.bf16.mxu0 0
      %407 = vmatpush1.bf16.msra.mxu0 %v394
      %408 = vmatprep.subr.bf16.mxu0 0
      %409 = vmatpush1.bf16.msra.mxu0 %v393
      %410 = vmatprep.subr.bf16.mxu0 0
      %411 = vmatpush1.bf16.msra.mxu0 %v392
      %412 = vmatprep.subr.bf16.mxu0 0
      %413 = vmatpush1.bf16.msra.mxu0 %v391
      %414 = vmatprep.subr.bf16.mxu0 0
      %415 = vmatpush1.bf16.msra.mxu0 %v390
      %416 = vmatprep.subr.bf16.mxu0 0
      %417 = vmatpush1.bf16.msra.mxu0 %v389
      %418 = vmatprep.subr.bf16.mxu0 0
      %419 = vmatpush1.bf16.msra.mxu0 %v388
      %420 = vmatprep.subr.bf16.mxu0 0
      %421 = vmatpush2.bf16.msra.mxu0 0
      %422 = vmatprep.subr.bf16.mxu0 0
      %423 = vmatpush2.bf16.msra.mxu0 0
      %424 = vmatprep.subr.bf16.mxu0 0
      %425 = vmatpush2.bf16.msra.mxu0 0
      %426 = vmatprep.subr.bf16.mxu0 0
      %427 = vmatpush2.bf16.msra.mxu0 0
      %428 = vmatprep.subr.bf16.mxu0 0
      %429 = vmatpush2.bf16.msra.mxu0 0
      %430 = vmatprep.subr.bf16.mxu0 0
      %431 = vmatpush2.bf16.msra.mxu0 0
      %432 = vmatprep.subr.bf16.mxu0 0
      %433 = vmatpush2.bf16.msra.mxu0 0
      %434 = vmatprep.subr.bf16.mxu0 0
      %435 = vmatpush2.bf16.msra.mxu0 0
      %436 = vmatprep.mubr.bf16.mxu0 0
      %437 = vmatmul.mubr.bf16.gmra.mxu0 %v337
      %v438 = vpop.f32.mrf.mxu0
      %v439 = vadd.f32 %v355, %v438
      %v440 = vpop.f32.mrf.mxu0
      %v441 = vpop.f32.mrf.mxu0
      %v442 = vpop.f32.mrf.mxu0
      %443 = vdwg.mxu0
      %444 = vst [vmem:[#allocation14] sm:$0xff] %v439
    $region61: #{tpu_custom_call.1} parent=1 // pred_fallthru
      _
    %v445 = vld [vmem:[#allocation14] sm:$0xff]
    %v446 = vld [vmem:[#allocation9] sm:$0xff]
    %vm447 = vcmask 64512
    %v449 = vsel %vm447, %v446, 0
    %451 = vmatprep.subr.mxu0 0.0
    %452 = vmatpush1.msra.mxu0 0.0
    %453 = vmatprep.subr.mxu0 0.0
    %454 = vmatpush1.msra.mxu0 0.0
    %455 = vmatprep.subr.mxu0 0.0
    %456 = vmatpush1.msra.mxu0 0.0
    %457 = vmatprep.subr.mxu0 0.0
    %458 = vmatpush1.msra.mxu0 0.0
    %459 = vmatprep.subr.mxu0 0.0
    %460 = vmatpush1.msra.mxu0 0.0
    %461 = vmatprep.subr.mxu0 0.0
    %462 = vmatpush1.msra.mxu0 0.0
    %463 = vmatprep.subr.mxu0 0.0
    %464 = vmatpush1.msra.mxu0 0.0
    %465 = vmatprep.subr.mxu0 0.0
    %466 = vmatpush1.msra.mxu0 0.0
    %467 = vmatprep.subr.mxu0 0.0
    %468 = vmatpush1.msra.mxu0 0.0
    %469 = vmatprep.subr.mxu0 0.0
    %470 = vmatpush1.msra.mxu0 0.0
    %471 = vmatprep.subr.mxu0 0.0
    %472 = vmatpush1.msra.mxu0 0.0
    %473 = vmatprep.subr.mxu0 0.0
    %474 = vmatpush1.msra.mxu0 0.0
    %475 = vmatprep.subr.mxu0 0.0
    %476 = vmatpush1.msra.mxu0 0.0
    %477 = vmatprep.subr.mxu0 0.0
    %478 = vmatpush1.msra.mxu0 0.0
    %479 = vmatprep.subr.mxu0 0.0
    %480 = vmatpush1.msra.mxu0 0.0
    %481 = vmatprep.subr.mxu0 0.0
    %482 = vmatpush1.msra.mxu0 %v324
    %483 = vmatprep.subr.mxu0 0.0
    %484 = vmatpush2.msra.mxu0 0.0
    %485 = vmatprep.subr.mxu0 0.0
    %486 = vmatpush2.msra.mxu0 0.0
    %487 = vmatprep.subr.mxu0 0.0
    %488 = vmatpush2.msra.mxu0 0.0
    %489 = vmatprep.subr.mxu0 0.0
    %490 = vmatpush2.msra.mxu0 0.0
    %491 = vmatprep.subr.mxu0 0.0
    %492 = vmatpush2.msra.mxu0 0.0
    %493 = vmatprep.subr.mxu0 0.0
    %494 = vmatpush2.msra.mxu0 0.0
    %495 = vmatprep.subr.mxu0 0.0
    %496 = vmatpush2.msra.mxu0 0.0
    %497 = vmatprep.subr.mxu0 0.0
    %498 = vmatpush2.msra.mxu0 0.0
    %499 = vmatprep.subr.mxu0 0.0
    %500 = vmatpush2.msra.mxu0 0.0
    %501 = vmatprep.subr.mxu0 0.0
    %502 = vmatpush2.msra.mxu0 0.0
    %503 = vmatprep.subr.mxu0 0.0
    %504 = vmatpush2.msra.mxu0 0.0
    %505 = vmatprep.subr.mxu0 0.0
    %506 = vmatpush2.msra.mxu0 0.0
    %507 = vmatprep.subr.mxu0 0.0
    %508 = vmatpush2.msra.mxu0 0.0
    %509 = vmatprep.subr.mxu0 0.0
    %510 = vmatpush2.msra.mxu0 0.0
    %511 = vmatprep.subr.mxu0 0.0
    %512 = vmatpush2.msra.mxu0 0.0
    %513 = vmatprep.subr.mxu0 0.0
    %514 = vmatpush2.msra.mxu0 0.0
    %515 = vmatprep.mubr.f32.mxu0 0.0
    %516 = vmatmul.mubr.f32.gmra.mxu0 %v449
    %v517 = vpop.f32.mrf.mxu0
    %v518 = vadd.f32 0.0, %v517
    %v519 = vpop.f32.mrf.mxu0
    %520 = vdwg.mxu0
    %v521 = vadd.f32 %v445, %v518
    %522 = vst [vmem:[#allocation14] sm:$0xff] %v521
    // Predicated region
    $region62: #{tpu_custom_call.1} parent=1 // pred_check
      _
    $region63: #{tpu_custom_call.1} parent=1 // pred_check_branch
      %524 = sbr.rel (0) target = $region65
    $region64: #{tpu_custom_call.1} parent=1 // pred_region
      %s526 = ssub.s32 128, 128
      %527 = vsyncadd [#allocation4], %s526
      %s529 = sshll.u32 [#allocation13], 4
      %s530 = int_to_ptr.vmem [resolvable:$true] %s529
      %532 = dma.vmem_to_hbm [thread:$0]  %s530, 128, %s8, [#allocation4]
    $region65: #{tpu_custom_call.1} parent=1 // pred_fallthru
      _
    // Predicated region
    $region66: #{tpu_custom_call.1} parent=1 // pred_check
      _
    $region67: #{tpu_custom_call.1} parent=1 // pred_check_branch
      %534 = sbr.rel (0) target = $region69
    $region68: #{tpu_custom_call.1} parent=1 // pred_region
      %s536 = ssub.s32 128, 128
      %537 = vsyncadd [#allocation15], %s536
      %s539 = sshll.u32 [#allocation14], 4
      %s540 = int_to_ptr.vmem [resolvable:$true] %s539
      %542 = dma.vmem_to_hbm [thread:$0]  %s540, 128, %s9, [#allocation15]
    $region69: #{tpu_custom_call.1} parent=1 // pred_fallthru
      _
    // Predicated region
    $region70: #{tpu_custom_call.1} parent=1 // pred_check
      _
    $region71: #{tpu_custom_call.1} parent=1 // pred_check_branch
      %544 = sbr.rel (0) target = $region73
    $region72: #{tpu_custom_call.1} parent=1 // pred_region
      %545 = dma.done [#allocation4], 128
    $region73: #{tpu_custom_call.1} parent=1 // pred_fallthru
      _
    // Predicated region
    $region74: #{tpu_custom_call.1} parent=1 // pred_check
      _
    $region75: #{tpu_custom_call.1} parent=1 // pred_check_branch
      %547 = sbr.rel (0) target = $region77
    $region76: #{tpu_custom_call.1} parent=1 // pred_region
      %548 = dma.done [#allocation15], 128
    $region77: #{tpu_custom_call.1} parent=1 // pred_fallthru
      _
    %549 = vsyncpa [#allocation3], 1
    %550 = vsyncpa [#allocation7], 1
    %551 = vsyncpa [#allocation10], 1
    %552 = vsyncpa [#allocation4], 1
    %553 = vsyncpa [#allocation15], 1
    %554 = vsyncpa [#allocation5], 1

</llo_original>
